<compile_context>
chip_gen: v6e
topology: v6e:2x2x1
jax: 0.10.0
libtpu: 0.0.40
codegen_flags: <defaults>
</compile_context>

<pallas_src>
import functools

import jax
import jax.numpy as jnp
from jax.experimental import pallas as pl
from jax.experimental.pallas import tpu as pltpu


def _round_up(x, m):
    return ((x + m - 1) // m) * m


def _bce_smooth_kernel(x_ref, t_ref, acc_ref, *, lo, hi, tile_rows, ncols,
                       steps, steps_per_core, first_tail_block,
                       full_rows, rem_cols, need_gate):
    """One grid step: accumulate BCE-with-logits partial sums for one tile.

    acc_ref is the (1, 8, ncols) output block for this core; it stays resident
    across the 'arbitrary' grid axis and doubles as the accumulator (P3).
    """
    c = pl.program_id(0)            # core split ("parallel")
    i = pl.program_id(1)            # streaming axis ("arbitrary")
    gstep = c * steps_per_core + i  # global block index along rows

    @pl.when(i == 0)
    def _init():
        acc_ref[...] = jnp.zeros_like(acc_ref)

    def _loss():
        x = x_ref[...].astype(jnp.float32)
        # label smoothing == torch.clamp(targets, lo, hi)
        t = jnp.clip(t_ref[...].astype(jnp.float32), lo, hi)
        # numerically stable BCEWithLogits: max(x,0) - x*t + log1p(exp(-|x|))
        return jnp.maximum(x, 0.0) - x * t + jnp.log1p(jnp.exp(-jnp.abs(x)))

    def _accumulate(loss):
        # Fold sublane-groups of 8 rows: pure VPU vreg adds, no cross-lane ops.
        part = loss.reshape(tile_rows // 8, 8, ncols).sum(axis=0)
        acc_ref[...] += part[None]

    if first_tail_block is None:
        # Every element of every real block is valid: zero masking work.
        if need_gate:
            @pl.when(gstep < steps)
            def _full():
                _accumulate(_loss())
        else:
            _accumulate(_loss())
    else:
        # Blocks strictly before the padded tail: hot path, no masking work.
        @pl.when(gstep < first_tail_block)
        def _full():
            _accumulate(_loss())

        # Only blocks touching the padded tail pay for the row/col mask.
        @pl.when(jnp.logical_and(gstep >= first_tail_block, gstep < steps))
        def _tail():
            loss = _loss()
            row = (jax.lax.broadcasted_iota(jnp.int32, (tile_rows, ncols), 0)
                   + gstep * tile_rows)
            col = jax.lax.broadcasted_iota(jnp.int32, (tile_rows, ncols), 1)
            valid = jnp.logical_or(
                row < full_rows,
                jnp.logical_and(row == full_rows, col < rem_cols))
            _accumulate(jnp.where(valid, loss, 0.0))


def bce_with_label_smoothing(logits, targets, number_of_classes, alpha=0.1):
    assert logits.shape == targets.shape
    lo = float(alpha) / 59.0   # matches the module's hard-coded `alpha / 59`
    hi = 1.0 - float(alpha) + float(alpha) / float(number_of_classes)
    n = int(logits.size)

    # ---- pick a layout -----------------------------------------------------
    c_dim = int(logits.shape[-1]) if logits.ndim >= 2 else 0
    nat_rows = n // c_dim if c_dim else 0
    direct = (logits.ndim >= 2 and c_dim % 128 == 0 and 128 <= c_dim <= 32768
              and nat_rows >= 256)

    if direct:
        # Lane-friendly trailing dim: stream the natural (rows, C) layout,
        # no HBM repack round trip.
        ncols = c_dim
        rows = nat_rows
        tile_rows = max(32, min(2048, ((1 << 20) // ncols) // 32 * 32))
        tile_rows = min(tile_rows, _round_up(rows, 32))
        x = logits.reshape(rows, ncols)
        t = targets.reshape(rows, ncols)
        full_rows, rem_cols = rows, 0
    else:
        # Tiny / odd trailing dim (e.g. C=4): lane-dense repack so every vreg
        # lane is populated.
        ncols = 512 if n >= 512 * 64 else 128
        rows = pl.cdiv(n, ncols)
        tile_rows = min(2048, _round_up(rows, 32))
        full_rows, rem_cols = n // ncols, n % ncols

    steps = pl.cdiv(rows, tile_rows)            # blocks with real data
    num_cores = 2 if steps >= 2 else 1          # v7x: one half per TensorCore
    steps_per_core = pl.cdiv(steps, num_cores)
    total_blocks = num_cores * steps_per_core

    if not direct:
        rows_pad = steps * tile_rows
        pad = rows_pad * ncols - n
        x = jnp.ravel(logits)
        t = jnp.ravel(targets)
        if pad:
            x = jnp.pad(x, (0, pad))
            t = jnp.pad(t, (0, pad))
        x = x.reshape(rows_pad, ncols)
        t = t.reshape(rows_pad, ncols)

    has_tail = (steps * tile_rows * ncols != n)
    first_tail_block = (full_rows // tile_rows) if has_tail else None
    need_gate = (not has_tail) and (total_blocks > steps)
    max_block = steps - 1

    kernel = functools.partial(
        _bce_smooth_kernel, lo=lo, hi=hi, tile_rows=tile_rows, ncols=ncols,
        steps=steps, steps_per_core=steps_per_core,
        first_tail_block=first_tail_block, full_rows=full_rows,
        rem_cols=rem_cols, need_gate=need_gate)

    in_map = lambda c, i, _s=steps_per_core, _m=max_block: (
        jnp.minimum(c * _s + i, _m), 0)
    in_spec = pl.BlockSpec((tile_rows, ncols), in_map)

    bytes_in = n * (jnp.dtype(logits.dtype).itemsize
                    + jnp.dtype(targets.dtype).itemsize)
    cost = pl.CostEstimate(flops=8 * n, transcendentals=2 * n,
                           bytes_accessed=bytes_in + num_cores * 8 * ncols * 4)

    partials = pl.pallas_call(
        kernel,
        out_shape=jax.ShapeDtypeStruct((num_cores, 8, ncols), jnp.float32),
        grid_spec=pltpu.PrefetchScalarGridSpec(
            num_scalar_prefetch=0,
            grid=(num_cores, steps_per_core),
            in_specs=[in_spec, in_spec],
            out_specs=pl.BlockSpec((1, 8, ncols), lambda c, i: (c, 0, 0)),
        ),
        compiler_params=pltpu.CompilerParams(
            dimension_semantics=("parallel", "arbitrary"),
            vmem_limit_bytes=32 * 1024 * 1024,
        ),
        cost_estimate=cost,
    )(x, t)

    # Tiny final reduce (<= 2*8*ncols f32) + mean scaling stay in plain XLA.
    return jnp.sum(partials) * jnp.float32(1.0 / n)


def _reference(logits, targets, number_of_classes, alpha=0.1):
    lo = alpha / 59.0
    hi = 1.0 - alpha + alpha / number_of_classes
    x = logits.astype(jnp.float32)
    t = jnp.clip(targets.astype(jnp.float32), lo, hi)
    loss = jnp.maximum(x, 0.0) - x * t + jnp.log1p(jnp.exp(-jnp.abs(x)))
    return jnp.mean(loss)


if __name__ == "__main__":
    number_of_classes = 4
    alpha = 0.1

    key = jax.random.PRNGKey(0)

    # Small shape implied by the module: batch=2, classes=4 (lane-dense repack).
    k1, k2, key = jax.random.split(key, 3)
    logits = jax.random.normal(k1, (2, number_of_classes), dtype=jnp.float32)
    targets = jax.random.uniform(k2, (2, number_of_classes), dtype=jnp.float32)
    out = jax.block_until_ready(
        bce_with_label_smoothing(logits, targets, number_of_classes, alpha))
    ref = _reference(logits, targets, number_of_classes, alpha)
    assert jnp.allclose(out, ref, atol=1e-5, rtol=1e-5), (out, ref)

    # Multi-block path: two-way core split, one clean block + one tail block.
    k1, k2, key = jax.random.split(key, 3)
    logits2 = jax.random.normal(k1, (4096, 300), dtype=jnp.float32)
    targets2 = jax.random.uniform(k2, (4096, 300), dtype=jnp.float32)
    out2 = jax.block_until_ready(
        bce_with_label_smoothing(logits2, targets2, number_of_classes, alpha))
    ref2 = _reference(logits2, targets2, number_of_classes, alpha)
    assert jnp.allclose(out2, ref2, atol=1e-5, rtol=1e-4), (out2, ref2)

    # Lane-friendly direct path (no HBM repack), bf16 in HBM, f32 in-kernel.
    k1, k2, key = jax.random.split(key, 3)
    logits3 = jax.random.normal(k1, (640, 256), dtype=jnp.bfloat16)
    targets3 = jax.random.uniform(k2, (640, 256), dtype=jnp.bfloat16)
    out3 = jax.block_until_ready(
        bce_with_label_smoothing(logits3, targets3, number_of_classes, alpha))
    ref3 = _reference(logits3, targets3, number_of_classes, alpha)
    assert jnp.allclose(out3, ref3, atol=1e-5, rtol=1e-4), (out3, ref3)

    print("KERNEL_OK")
</pallas_src>

<mosaic_0001>
module attributes {stable_mosaic.version = 11 : i64} {
  func.func @_bce_smooth_kernel(%arg0: i32, %arg1: i32, %arg2: memref<32x128xf32, #tpu.memory_space<vmem>>, %arg3: memref<32x128xf32, #tpu.memory_space<vmem>>, %arg4: memref<1x8x128xf32, #tpu.memory_space<vmem>>) attributes {dimension_semantics = [#tpu.dimension_semantics<parallel>, #tpu.dimension_semantics<arbitrary>], iteration_bounds = array<i64: 1, 1>, scalar_prefetch = 0 : i64, scratch_operands = 0 : i64, tpu.core_type = #tpu.core_type<tc>, window_params = [{transform_indices = @transform_0, window_bounds = array<i64: 32, 128>}, {transform_indices = @transform_1, window_bounds = array<i64: 32, 128>}, {transform_indices = @transform_2, window_bounds = array<i64: 1, 8, 128>}]} {
    %c1_i32 = arith.constant 1 : i32
    %0 = arith.muli %arg0, %c1_i32 : i32
    %1 = arith.addi %0, %arg1 : i32
    %c0_i32 = arith.constant 0 : i32
    %2 = arith.cmpi eq, %arg1, %c0_i32 : i32
    %3 = arith.extui %2 : i1 to i32
    %c0_i32_0 = arith.constant 0 : i32
    %4 = arith.cmpi ne, %3, %c0_i32_0 : i32
    scf.if %4 {
      %cst = arith.constant 0.000000e+00 : f32
      %13 = vector.broadcast %cst : f32 to vector<1x8x128xf32>
      %c0 = arith.constant 0 : index
      %c0_6 = arith.constant 0 : index
      %c0_7 = arith.constant 0 : index
      %14 = vector.load %arg4[%c0, %c0_6, %c0_7] : memref<1x8x128xf32, #tpu.memory_space<vmem>>, vector<1x8x128xf32>
      tpu.vector_store %arg4[%c0, %c0_6, %c0_7], %13 {strides = array<i32>} : memref<1x8x128xf32, #tpu.memory_space<vmem>>, vector<1x8x128xf32>,
    } else {
    }
    %c0_i32_1 = arith.constant 0 : i32
    %5 = arith.cmpi slt, %1, %c0_i32_1 : i32
    %6 = arith.extui %5 : i1 to i32
    %c0_i32_2 = arith.constant 0 : i32
    %7 = arith.cmpi ne, %6, %c0_i32_2 : i32
    scf.if %7 {
      %c0 = arith.constant 0 : index
      %c0_6 = arith.constant 0 : index
      %13 = vector.load %arg2[%c0, %c0_6] : memref<32x128xf32, #tpu.memory_space<vmem>>, vector<32x128xf32>
      %c0_7 = arith.constant 0 : index
      %c0_8 = arith.constant 0 : index
      %14 = vector.load %arg3[%c0_7, %c0_8] : memref<32x128xf32, #tpu.memory_space<vmem>>, vector<32x128xf32>
      %cst = arith.constant 0.00169491523 : f32
      %cst_9 = arith.constant 9.250000e-01 : f32
      %15 = vector.broadcast %cst : f32 to vector<32x128xf32>
      %16 = arith.maximumf %15, %14 : vector<32x128xf32>
      %17 = vector.broadcast %cst_9 : f32 to vector<32x128xf32>
      %18 = arith.minimumf %17, %16 : vector<32x128xf32>
      %cst_10 = arith.constant 0.000000e+00 : f32
      %19 = vector.broadcast %cst_10 : f32 to vector<32x128xf32>
      %20 = arith.maximumf %13, %19 : vector<32x128xf32>
      %21 = arith.mulf %13, %18 : vector<32x128xf32>
      %22 = arith.subf %20, %21 : vector<32x128xf32>
      %23 = math.absf %13 : vector<32x128xf32>
      %cst_11 = arith.constant 0.000000e+00 : f32
      %24 = vector.broadcast %cst_11 : f32 to vector<32x128xf32>
      %25 = arith.subf %24, %23 : vector<32x128xf32>
      %26 = math.exp %25 : vector<32x128xf32>
      %27 = math.log1p %26 : vector<32x128xf32>
      %28 = arith.addf %22, %27 : vector<32x128xf32>
      %29 = vector.shape_cast %28 : vector<32x128xf32> to vector<4x8x128xf32>
      %cst_12 = arith.constant dense<0.000000e+00> : vector<8x128xf32>
      %30 = vector.multi_reduction <add>, %29, %cst_12 [0] : vector<4x8x128xf32> to vector<8x128xf32>
      %c0_13 = arith.constant 0 : index
      %c0_14 = arith.constant 0 : index
      %c0_15 = arith.constant 0 : index
      %31 = vector.load %arg4[%c0_13, %c0_14, %c0_15] : memref<1x8x128xf32, #tpu.memory_space<vmem>>, vector<1x8x128xf32>
      %32 = vector.shape_cast %30 : vector<8x128xf32> to vector<1x8x128xf32>
      %33 = arith.addf %31, %32 : vector<1x8x128xf32>
      %c0_16 = arith.constant 0 : index
      %c0_17 = arith.constant 0 : index
      %c0_18 = arith.constant 0 : index
      %34 = vector.load %arg4[%c0_16, %c0_17, %c0_18] : memref<1x8x128xf32, #tpu.memory_space<vmem>>, vector<1x8x128xf32>
      tpu.vector_store %arg4[%c0_16, %c0_17, %c0_18], %33 {strides = array<i32>} : memref<1x8x128xf32, #tpu.memory_space<vmem>>, vector<1x8x128xf32>,
    } else {
    }
    %c0_i32_3 = arith.constant 0 : i32
    %8 = arith.cmpi sge, %1, %c0_i32_3 : i32
    %c1_i32_4 = arith.constant 1 : i32
    %9 = arith.cmpi slt, %1, %c1_i32_4 : i32
    %10 = arith.andi %8, %9 : i1
    %11 = arith.extui %10 : i1 to i32
    %c0_i32_5 = arith.constant 0 : i32
    %12 = arith.cmpi ne, %11, %c0_i32_5 : i32
    scf.if %12 {
      %c0 = arith.constant 0 : index
      %c0_6 = arith.constant 0 : index
      %13 = vector.load %arg2[%c0, %c0_6] : memref<32x128xf32, #tpu.memory_space<vmem>>, vector<32x128xf32>
      %c0_7 = arith.constant 0 : index
      %c0_8 = arith.constant 0 : index
      %14 = vector.load %arg3[%c0_7, %c0_8] : memref<32x128xf32, #tpu.memory_space<vmem>>, vector<32x128xf32>
      %cst = arith.constant 0.00169491523 : f32
      %cst_9 = arith.constant 9.250000e-01 : f32
      %15 = vector.broadcast %cst : f32 to vector<32x128xf32>
      %16 = arith.maximumf %15, %14 : vector<32x128xf32>
      %17 = vector.broadcast %cst_9 : f32 to vector<32x128xf32>
      %18 = arith.minimumf %17, %16 : vector<32x128xf32>
      %cst_10 = arith.constant 0.000000e+00 : f32
      %19 = vector.broadcast %cst_10 : f32 to vector<32x128xf32>
      %20 = arith.maximumf %13, %19 : vector<32x128xf32>
      %21 = arith.mulf %13, %18 : vector<32x128xf32>
      %22 = arith.subf %20, %21 : vector<32x128xf32>
      %23 = math.absf %13 : vector<32x128xf32>
      %cst_11 = arith.constant 0.000000e+00 : f32
      %24 = vector.broadcast %cst_11 : f32 to vector<32x128xf32>
      %25 = arith.subf %24, %23 : vector<32x128xf32>
      %26 = math.exp %25 : vector<32x128xf32>
      %27 = math.log1p %26 : vector<32x128xf32>
      %28 = arith.addf %22, %27 : vector<32x128xf32>
      %29 = tpu.iota {dimensions = array<i32: 0>} : vector<32x128xi32>
      %c32_i32 = arith.constant 32 : i32
      %30 = arith.muli %1, %c32_i32 : i32
      %31 = vector.broadcast %30 : i32 to vector<32x128xi32>
      %32 = arith.addi %29, %31 : vector<32x128xi32>
      %33 = tpu.iota {dimensions = array<i32: 1>} : vector<32x128xi32>
      %c0_i32_12 = arith.constant 0 : i32
      %34 = vector.broadcast %c0_i32_12 : i32 to vector<32x128xi32>
      %35 = arith.cmpi slt, %32, %34 : vector<32x128xi32>
      %c0_i32_13 = arith.constant 0 : i32
      %36 = vector.broadcast %c0_i32_13 : i32 to vector<32x128xi32>
      %37 = arith.cmpi eq, %32, %36 : vector<32x128xi32>
      %c8_i32 = arith.constant 8 : i32
      %38 = vector.broadcast %c8_i32 : i32 to vector<32x128xi32>
      %39 = arith.cmpi slt, %33, %38 : vector<32x128xi32>
      %40 = arith.andi %37, %39 : vector<32x128xi1>
      %41 = arith.ori %35, %40 : vector<32x128xi1>
      %cst_14 = arith.constant 0.000000e+00 : f32
      %42 = vector.broadcast %cst_14 : f32 to vector<32x128xf32>
      %43 = arith.select %41, %28, %42 : vector<32x128xi1>, vector<32x128xf32>
      %44 = vector.shape_cast %43 : vector<32x128xf32> to vector<4x8x128xf32>
      %cst_15 = arith.constant dense<0.000000e+00> : vector<8x128xf32>
      %45 = vector.multi_reduction <add>, %44, %cst_15 [0] : vector<4x8x128xf32> to vector<8x128xf32>
      %c0_16 = arith.constant 0 : index
      %c0_17 = arith.constant 0 : index
      %c0_18 = arith.constant 0 : index
      %46 = vector.load %arg4[%c0_16, %c0_17, %c0_18] : memref<1x8x128xf32, #tpu.memory_space<vmem>>, vector<1x8x128xf32>
      %47 = vector.shape_cast %45 : vector<8x128xf32> to vector<1x8x128xf32>
      %48 = arith.addf %46, %47 : vector<1x8x128xf32>
      %c0_19 = arith.constant 0 : index
      %c0_20 = arith.constant 0 : index
      %c0_21 = arith.constant 0 : index
      %49 = vector.load %arg4[%c0_19, %c0_20, %c0_21] : memref<1x8x128xf32, #tpu.memory_space<vmem>>, vector<1x8x128xf32>
      tpu.vector_store %arg4[%c0_19, %c0_20, %c0_21], %48 {strides = array<i32>} : memref<1x8x128xf32, #tpu.memory_space<vmem>>, vector<1x8x128xf32>,
    } else {
    }
    return
  }
  func.func @transform_0(%arg0: i32, %arg1: i32) -> (i32, i32) {
    %c1_i32 = arith.constant 1 : i32
    %0 = arith.muli %arg0, %c1_i32 : i32
    %1 = arith.addi %0, %arg1 : i32
    %c0_i32 = arith.constant 0 : i32
    %2 = arith.minsi %1, %c0_i32 : i32
    %c0_i32_0 = arith.constant 0 : i32
    %c0_i32_1 = arith.constant 0 : i32
    return %2, %c0_i32_0 : i32, i32
  }
  func.func @transform_1(%arg0: i32, %arg1: i32) -> (i32, i32) {
    %c1_i32 = arith.constant 1 : i32
    %0 = arith.muli %arg0, %c1_i32 : i32
    %1 = arith.addi %0, %arg1 : i32
    %c0_i32 = arith.constant 0 : i32
    %2 = arith.minsi %1, %c0_i32 : i32
    %c0_i32_0 = arith.constant 0 : i32
    %c0_i32_1 = arith.constant 0 : i32
    return %2, %c0_i32_0 : i32, i32
  }
  func.func @transform_2(%arg0: i32, %arg1: i32) -> (i32, i32, i32) {
    %c0_i32 = arith.constant 0 : i32
    %c0_i32_0 = arith.constant 0 : i32
    %c0_i32_1 = arith.constant 0 : i32
    return %arg0, %c0_i32, %c0_i32_0 : i32, i32, i32
  }
}

</mosaic_0001>

<llo_original>
// kernel: tpu_custom_call.1
$region0: #{tpu_custom_call.1}
  #allocation0 [shape = 'u32[]', space=smem, size = 0x4, offset = 0x4, fixed_abs, tag = 'smem constant byte address 0x4 - core index']
  #allocation1 [shape = 'u32[144,128]{1,0:T(1,128)}', space=vmem, size = 0x12000, scoped, tag = 'internal scratch']
  %s0 = inlined_call_operand.hbm [shape: f32[32,128], index: 0, kind: input, shape index: {}]
  %s1 = inlined_call_operand.hbm [shape: f32[32,128], index: 1, kind: input, shape index: {}]
  %s2 = inlined_call_operand.hbm [shape: f32[1,8,128], index: 2, kind: output, shape index: {}]
  %s3 = sld [smem:[#allocation0]]
  $region38: #{tpu_custom_call.1} parent=0
    _
  %s5 = ssub.s32 1, %s3
  %s6 = scalar_select 0, %s5, %s3
  $region1: #{tpu_custom_call.1} parent=0
    #allocation2 [shape = 'u8[16384]{0}', space=vmem, size = 0x4000, scoped, tag = 'input window, operand 0, single buffered']
    #allocation3 [shape = 's32[1]{0}', space=sflag, size = 0x4, scoped, tag = 'scoped memory for tpu_custom_call.1']
    #allocation4 [shape = 's32[1]{0}', space=sflag, size = 0x4, scoped, tag = 'scoped memory for tpu_custom_call.1']
    #allocation5 [shape = 'u8[16384]{0}', space=vmem, size = 0x4000, scoped, tag = 'input window, operand 1, single buffered']
    #allocation6 [shape = 's32[1]{0}', space=sflag, size = 0x4, scoped, tag = 'scoped memory for tpu_custom_call.1']
    #allocation7 [shape = 'u8[4096]{0}', space=vmem, size = 0x1000, scoped, tag = 'output window, operand 0, single buffered']
    %7 = vsyncpa [#allocation3], 0
    %8 = vsyncpa [#allocation6], 0
    %9 = vsyncpa [#allocation4], 0
    // Predicated region
    $region2: #{tpu_custom_call.1} parent=1 // pred_check
      _
    $region3: #{tpu_custom_call.1} parent=1 // pred_check_branch
      %11 = sbr.rel (0) target = $region5
    $region4: #{tpu_custom_call.1} parent=1 // pred_region
      %s12 = sadd.s32 0, 0
      %p13 = scmp.lt.s32.totalorder %s12, 0
      %s14 = scalar_select %p13, %s12, 0
      %s15 = smul.u32 4, %s14
      %s17 = ssub.s32 512, 512
      %18 = vsyncadd [#allocation3], %s17
      %s19 = smul.addr %s15, 128
      %s20 = scalar_lea.hbm %s0, %s19
      %s21 = sshll.u32 [#allocation2], 4
      %s22 = int_to_ptr.vmem [resolvable:$true] %s21
      %27 = dma.hbm_to_vmem [thread:$0]  %s20, 512, %s22, [#allocation3], 128, 128, 8
    $region5: #{tpu_custom_call.1} parent=1 // pred_fallthru
      _
    // Predicated region
    $region6: #{tpu_custom_call.1} parent=1 // pred_check
      _
    $region7: #{tpu_custom_call.1} parent=1 // pred_check_branch
      %29 = sbr.rel (0) target = $region9
    $region8: #{tpu_custom_call.1} parent=1 // pred_region
      %s30 = sadd.s32 0, 0
      %p31 = scmp.lt.s32.totalorder %s30, 0
      %s32 = scalar_select %p31, %s30, 0
      %s33 = smul.u32 4, %s32
      %s35 = ssub.s32 512, 512
      %36 = vsyncadd [#allocation6], %s35
      %s37 = smul.addr %s33, 128
      %s38 = scalar_lea.hbm %s1, %s37
      %s39 = sshll.u32 [#allocation5], 4
      %s40 = int_to_ptr.vmem [resolvable:$true] %s39
      %45 = dma.hbm_to_vmem [thread:$0]  %s38, 512, %s40, [#allocation6], 128, 128, 8
    $region9: #{tpu_custom_call.1} parent=1 // pred_fallthru
      _
    // Predicated region
    $region10: #{tpu_custom_call.1} parent=1 // pred_check
      _
    $region11: #{tpu_custom_call.1} parent=1 // pred_check_branch
      %47 = sbr.rel (0) target = $region13
    $region12: #{tpu_custom_call.1} parent=1 // pred_region
      %48 = dma.done [#allocation3], 512
    $region13: #{tpu_custom_call.1} parent=1 // pred_fallthru
      _
    // Predicated region
    $region14: #{tpu_custom_call.1} parent=1 // pred_check
      _
    $region15: #{tpu_custom_call.1} parent=1 // pred_check_branch
      %50 = sbr.rel (0) target = $region17
    $region16: #{tpu_custom_call.1} parent=1 // pred_region
      %51 = dma.done [#allocation6], 512
    $region17: #{tpu_custom_call.1} parent=1 // pred_fallthru
      _
    %s52 = sadd.s32 0, 0
    %p53 = scmp.lt.s32.totalorder %s52, 0
    %s54 = scalar_select %p53, %s52, 0
    %s55 = smul.u32 4, %s54
    %s56 = sadd.s32 0, 0
    %p57 = scmp.lt.s32.totalorder %s56, 0
    %s58 = scalar_select %p57, %s56, 0
    %s59 = smul.u32 4, %s58
    %s60 = sadd.s32 0, 0
    %p61 = scmp.eq.s32.totalorder 0, 0
    // Predicated region
    $region18: #{tpu_custom_call.1} parent=1 // pred_check
      %p62 = pneg %p61
    $region19: #{tpu_custom_call.1} parent=1 // pred_check_branch
      %64 = sbr.rel (%p62) target = $region21
    $region20: #{tpu_custom_call.1} parent=1 // pred_region
      %65 = vst [vmem:[#allocation7] sm:$0xff] 0.0
    $region21: #{tpu_custom_call.1} parent=1 // pred_fallthru
      _
    %p66 = scmp.lt.s32.totalorder %s60, 0
    // Predicated region
    $region22: #{tpu_custom_call.1} parent=1 // pred_check
      %p67 = pneg %p66
    $region23: #{tpu_custom_call.1} parent=1 // pred_check_branch
      %69 = sbr.rel (%p67) target = $region25
    $region24: #{tpu_custom_call.1} parent=1 // pred_region
      %v70 = vld [vmem:[#allocation2] sm:$0xff]
      %v71 = vld [vmem:[#allocation2 + $0x8] sm:$0xff]
      %v72 = vld [vmem:[#allocation2 + $0x10] sm:$0xff]
      %v73 = vld [vmem:[#allocation2 + $0x18] sm:$0xff]
      %v74 = vld [vmem:[#allocation5] sm:$0xff]
      %v75 = vld [vmem:[#allocation5 + $0x8] sm:$0xff]
      %v76 = vld [vmem:[#allocation5 + $0x10] sm:$0xff]
      %v77 = vld [vmem:[#allocation5 + $0x18] sm:$0xff]
      %v78 = vmax.f32 %v74, 0.0016949152
      %v79 = vmax.f32 %v75, 0.0016949152
      %v80 = vmax.f32 %v76, 0.0016949152
      %v81 = vmax.f32 %v77, 0.0016949152
      %v82 = vmin.f32 %v78, 0.925
      %v83 = vmin.f32 %v79, 0.925
      %v84 = vmin.f32 %v80, 0.925
      %v85 = vmin.f32 %v81, 0.925
      %v86 = vmax.f32 %v70, 0.0
      %v87 = vmax.f32 %v71, 0.0
      %v88 = vmax.f32 %v72, 0.0
      %v89 = vmax.f32 %v73, 0.0
      %v90 = vmul.f32 %v70, %v82
      %v91 = vmul.f32 %v71, %v83
      %v92 = vmul.f32 %v72, %v84
      %v93 = vmul.f32 %v73, %v85
      %v94 = vsub.f32 %v86, %v90
      %v95 = vsub.f32 %v87, %v91
      %v96 = vsub.f32 %v88, %v92
      %v97 = vsub.f32 %v89, %v93
      %v98 = vand.u32 2147483647, %v70
      %v99 = vand.u32 2147483647, %v71
      %v100 = vand.u32 2147483647, %v72
      %v101 = vand.u32 2147483647, %v73
      %v102 = vsub.f32 0.0, %v98
      %v103 = vsub.f32 0.0, %v99
      %v104 = vsub.f32 0.0, %v100
      %v105 = vsub.f32 0.0, %v101
      %v106 = vmul.f32 %v102, 1.442695
      %v107 = vpow.pop %v106
      %v108 = vmul.f32 %v103, 1.442695
      %v109 = vpow.pop %v108
      %v110 = vmul.f32 %v104, 1.442695
      %v111 = vpow.pop %v110
      %v112 = vmul.f32 %v105, 1.442695
      %v113 = vpow.pop %v112
      %v114 = vadd.f32 %v107, 1.0
      %v115 = vlog2.pop %v114
      %v116 = vmul.f32 %v115, 0.6931472
      %v117 = vmul.f32 -0.5, %v107
      %v118 = vadd.f32 %v117, 1.0
      %v119 = vmul.f32 %v118, %v107
      %v120 = vand.u32 2147483647, %v107
      %vm121 = vcmp.lt.f32.partialorder %v120, 0.0004427343
      %v122 = vsel %vm121, %v119, %v116
      %v123 = vadd.f32 %v109, 1.0
      %v124 = vlog2.pop %v123
      %v125 = vmul.f32 %v124, 0.6931472
      %v126 = vmul.f32 -0.5, %v109
      %v127 = vadd.f32 %v126, 1.0
      %v128 = vmul.f32 %v127, %v109
      %v129 = vand.u32 2147483647, %v109
      %vm130 = vcmp.lt.f32.partialorder %v129, 0.0004427343
      %v131 = vsel %vm130, %v128, %v125
      %v132 = vadd.f32 %v111, 1.0
      %v133 = vlog2.pop %v132
      %v134 = vmul.f32 %v133, 0.6931472
      %v135 = vmul.f32 -0.5, %v111
      %v136 = vadd.f32 %v135, 1.0
      %v137 = vmul.f32 %v136, %v111
      %v138 = vand.u32 2147483647, %v111
      %vm139 = vcmp.lt.f32.partialorder %v138, 0.0004427343
      %v140 = vsel %vm139, %v137, %v134
      %v141 = vadd.f32 %v113, 1.0
      %v142 = vlog2.pop %v141
      %v143 = vmul.f32 %v142, 0.6931472
      %v144 = vmul.f32 -0.5, %v113
      %v145 = vadd.f32 %v144, 1.0
      %v146 = vmul.f32 %v145, %v113
      %v147 = vand.u32 2147483647, %v113
      %vm148 = vcmp.lt.f32.partialorder %v147, 0.0004427343
      %v149 = vsel %vm148, %v146, %v143
      %v150 = vadd.f32 %v94, %v122
      %v151 = vadd.f32 %v95, %v131
      %v152 = vadd.f32 %v96, %v140
      %v153 = vadd.f32 %v97, %v149
      %v154 = vadd.f32 %v150, %v151
      %v155 = vadd.f32 %v154, %v152
      %v156 = vadd.f32 %v155, %v153
      %v157 = vld [vmem:[#allocation7] sm:$0xff]
      %v158 = vadd.f32 %v157, %v156
      %159 = vst [vmem:[#allocation7] sm:$0xff] %v158
    $region25: #{tpu_custom_call.1} parent=1 // pred_fallthru
      _
    %p160 = scmp.ge.s32.totalorder %s60, 0
    %p161 = scmp.lt.s32.totalorder %s60, 1
    %p162 = pnand %p160, %p161
    %p163 = pneg %p162
    // Predicated region
    $region26: #{tpu_custom_call.1} parent=1 // pred_check
      _
    $region27: #{tpu_custom_call.1} parent=1 // pred_check_branch
      %165 = sbr.rel (%p162) target = $region29
    $region28: #{tpu_custom_call.1} parent=1 // pred_region
      %v166 = vld [vmem:[#allocation2] sm:$0xff]
      %v167 = vld [vmem:[#allocation2 + $0x8] sm:$0xff]
      %v168 = vld [vmem:[#allocation2 + $0x10] sm:$0xff]
      %v169 = vld [vmem:[#allocation2 + $0x18] sm:$0xff]
      %v170 = vld [vmem:[#allocation5] sm:$0xff]
      %v171 = vld [vmem:[#allocation5 + $0x8] sm:$0xff]
      %v172 = vld [vmem:[#allocation5 + $0x10] sm:$0xff]
      %v173 = vld [vmem:[#allocation5 + $0x18] sm:$0xff]
      %v174 = vmax.f32 %v170, 0.0016949152
      %v175 = vmax.f32 %v171, 0.0016949152
      %v176 = vmax.f32 %v172, 0.0016949152
      %v177 = vmax.f32 %v173, 0.0016949152
      %v178 = vmin.f32 %v174, 0.925
      %v179 = vmin.f32 %v175, 0.925
      %v180 = vmin.f32 %v176, 0.925
      %v181 = vmin.f32 %v177, 0.925
      %v182 = vmax.f32 %v166, 0.0
      %v183 = vmax.f32 %v167, 0.0
      %v184 = vmax.f32 %v168, 0.0
      %v185 = vmax.f32 %v169, 0.0
      %v186 = vmul.f32 %v166, %v178
      %v187 = vmul.f32 %v167, %v179
      %v188 = vmul.f32 %v168, %v180
      %v189 = vmul.f32 %v169, %v181
      %v190 = vsub.f32 %v182, %v186
      %v191 = vsub.f32 %v183, %v187
      %v192 = vsub.f32 %v184, %v188
      %v193 = vsub.f32 %v185, %v189
      %v194 = vand.u32 2147483647, %v166
      %v195 = vand.u32 2147483647, %v167
      %v196 = vand.u32 2147483647, %v168
      %v197 = vand.u32 2147483647, %v169
      %v198 = vsub.f32 0.0, %v194
      %v199 = vsub.f32 0.0, %v195
      %v200 = vsub.f32 0.0, %v196
      %v201 = vsub.f32 0.0, %v197
      %v202 = vmul.f32 %v198, 1.442695
      %v203 = vpow.pop %v202
      %v204 = vmul.f32 %v199, 1.442695
      %v205 = vpow.pop %v204
      %v206 = vmul.f32 %v200, 1.442695
      %v207 = vpow.pop %v206
      %v208 = vmul.f32 %v201, 1.442695
      %v209 = vpow.pop %v208
      %v210 = vadd.f32 %v203, 1.0
      %v211 = vlog2.pop %v210
      %v212 = vmul.f32 %v211, 0.6931472
      %v213 = vmul.f32 -0.5, %v203
      %v214 = vadd.f32 %v213, 1.0
      %v215 = vmul.f32 %v214, %v203
      %v216 = vand.u32 2147483647, %v203
      %vm217 = vcmp.lt.f32.partialorder %v216, 0.0004427343
      %v218 = vsel %vm217, %v215, %v212
      %v219 = vadd.f32 %v205, 1.0
      %v220 = vlog2.pop %v219
      %v221 = vmul.f32 %v220, 0.6931472
      %v222 = vmul.f32 -0.5, %v205
      %v223 = vadd.f32 %v222, 1.0
      %v224 = vmul.f32 %v223, %v205
      %v225 = vand.u32 2147483647, %v205
      %vm226 = vcmp.lt.f32.partialorder %v225, 0.0004427343
      %v227 = vsel %vm226, %v224, %v221
      %v228 = vadd.f32 %v207, 1.0
      %v229 = vlog2.pop %v228
      %v230 = vmul.f32 %v229, 0.6931472
      %v231 = vmul.f32 -0.5, %v207
      %v232 = vadd.f32 %v231, 1.0
      %v233 = vmul.f32 %v232, %v207
      %v234 = vand.u32 2147483647, %v207
      %vm235 = vcmp.lt.f32.partialorder %v234, 0.0004427343
      %v236 = vsel %vm235, %v233, %v230
      %v237 = vadd.f32 %v209, 1.0
      %v238 = vlog2.pop %v237
      %v239 = vmul.f32 %v238, 0.6931472
      %v240 = vmul.f32 -0.5, %v209
      %v241 = vadd.f32 %v240, 1.0
      %v242 = vmul.f32 %v241, %v209
      %v243 = vand.u32 2147483647, %v209
      %vm244 = vcmp.lt.f32.partialorder %v243, 0.0004427343
      %v245 = vsel %vm244, %v242, %v239
      %v246 = vadd.f32 %v190, %v218
      %v247 = vadd.f32 %v191, %v227
      %v248 = vadd.f32 %v192, %v236
      %v249 = vadd.f32 %v193, %v245
      %v250 = vlaneseq
      %v251 = vshrl.u32 %v250, 7
      %v252 = vadd.s32 %v251, 8
      %v253 = vadd.s32 %v251, 16
      %v254 = vadd.s32 %v251, 24
      %s255 = smul.u32 %s60, 32
      %v256 = vstv %s255
      %v257 = vadd.s32 %v251, %v256
      %v258 = vadd.s32 %v252, %v256
      %v259 = vadd.s32 %v253, %v256
      %v260 = vadd.s32 %v254, %v256
      %v261 = vlaneseq
      %v262 = vand.u32 %v261, 127
      %vm263 = vcmp.lt.s32.totalorder %v257, 0
      %vm264 = vcmp.lt.s32.totalorder %v258, 0
      %vm265 = vcmp.lt.s32.totalorder %v259, 0
      %vm266 = vcmp.lt.s32.totalorder %v260, 0
      %vm267 = vcmp.eq.s32.totalorder %v257, 0
      %vm268 = vcmp.eq.s32.totalorder %v258, 0
      %vm269 = vcmp.eq.s32.totalorder %v259, 0
      %vm270 = vcmp.eq.s32.totalorder %v260, 0
      %vm271 = vcmp.lt.s32.totalorder %v262, 8
      %vm272 = vmand %vm267, %vm271
      %vm273 = vmand %vm268, %vm271
      %vm274 = vmand %vm269, %vm271
      %vm275 = vmand %vm270, %vm271
      %vm276 = vmor %vm263, %vm272
      %vm277 = vmor %vm264, %vm273
      %vm278 = vmor %vm265, %vm274
      %vm279 = vmor %vm266, %vm275
      %v280 = vsel %vm276, %v246, 0.0
      %v281 = vsel %vm277, %v247, 0.0
      %v282 = vsel %vm278, %v248, 0.0
      %v283 = vsel %vm279, %v249, 0.0
      %v284 = vadd.f32 %v280, %v281
      %v285 = vadd.f32 %v284, %v282
      %v286 = vadd.f32 %v285, %v283
      %v287 = vld [vmem:[#allocation7] sm:$0xff]
      %v288 = vadd.f32 %v287, %v286
      %289 = vst [vmem:[#allocation7] sm:$0xff] %v288
    $region29: #{tpu_custom_call.1} parent=1 // pred_fallthru
      _
    // Predicated region
    $region30: #{tpu_custom_call.1} parent=1 // pred_check
      _
    $region31: #{tpu_custom_call.1} parent=1 // pred_check_branch
      %291 = sbr.rel (0) target = $region33
    $region32: #{tpu_custom_call.1} parent=1 // pred_region
      %s293 = ssub.s32 128, 128
      %294 = vsyncadd [#allocation4], %s293
      %s296 = sshll.u32 [#allocation7], 4
      %s297 = int_to_ptr.vmem [resolvable:$true] %s296
      %299 = dma.vmem_to_hbm [thread:$0]  %s297, 128, %s2, [#allocation4]
    $region33: #{tpu_custom_call.1} parent=1 // pred_fallthru
      _
    // Predicated region
    $region34: #{tpu_custom_call.1} parent=1 // pred_check
      _
    $region35: #{tpu_custom_call.1} parent=1 // pred_check_branch
      %301 = sbr.rel (0) target = $region37
    $region36: #{tpu_custom_call.1} parent=1 // pred_region
      %302 = dma.done [#allocation4], 128
    $region37: #{tpu_custom_call.1} parent=1 // pred_fallthru
      _
    %303 = vsyncpa [#allocation3], 1
    %304 = vsyncpa [#allocation6], 1
    %305 = vsyncpa [#allocation4], 1

</llo_original>
